<compile_context>
chip_gen: v7x
topology: tpu7x:2x2x1
jax: 0.10.0
libtpu: 0.0.40
codegen_flags: <defaults>
</compile_context>

<pallas_src>
import jax
import jax.numpy as jnp
from jax.experimental import pallas as pl
from jax.experimental.pallas import tpu as pltpu

HIDDEN = 768
LN_EPS = 1e-6


def _round_up(x: int, m: int) -> int:
    return ((x + m - 1) // m) * m


def _choose_tm(M: int) -> int:
    """M-tile: big enough to amortize the ~0.35us/step overhead, >=2 grid steps
    for v7x megacore whenever M allows it."""
    if M >= 1024:
        return 512              # multiple of 256 (v6e/v7x 2x256 MXU) and 128 (v5e); sweep 512-1024
    if M <= 16:
        return M                # single full-extent tile (always layout-legal)
    tm = _round_up((M + 1) // 2, 16)     # >= 2 grid steps so both v7x TCs get work
    return min(tm, _round_up(M, 8))


# ---------------------------------------------------------------------------
# Fused kernel (one M-tile per grid step):
#   patches tile : [tm, K]      (bf16; K unpadded)
#   w_pe         : [K, 768]     (bf16, resident; transform-normalize folded in)
#   b_pe         : [1, 768]     (f32,  resident; transform-normalize folded in)
#   gamma/beta   : [1, 768]     (f32,  resident)
#   w_proj       : [768, D_pad] (bf16, resident; zero-padded columns)
#   out tile     : [tm, D_pad]  (lane-dense)
# ---------------------------------------------------------------------------
def _encoder_kernel(p_ref, wpe_ref, bpe_ref, g_ref, beta_ref, wproj_ref, o_ref):
    # patch-embed matmul: bf16 operands, f32 MXU accumulation.  The per-channel
    # normalization is folded into wpe/bpe, so the tile feeds the MXU directly.
    t = jnp.dot(p_ref[...], wpe_ref[...],
                preferred_element_type=jnp.float32) + bpe_ref[...]

    # final LayerNorm over hidden=768: single statistics pass (sum, sum-of-squares)
    inv_h = jnp.float32(1.0 / HIDDEN)
    mu = jnp.sum(t, axis=-1, keepdims=True) * inv_h
    var = jnp.sum(t * t, axis=-1, keepdims=True) * inv_h - mu * mu
    y = (t - mu) * jax.lax.rsqrt(var + LN_EPS) * g_ref[...] + beta_ref[...]

    # proj_out: Linear(768 -> dim, bias=False); lane-dense padded output width
    o_ref[...] = jnp.dot(y.astype(jnp.bfloat16), wproj_ref[...],
                         preferred_element_type=jnp.float32).astype(o_ref.dtype)


def encoder_pallas(patches, w_pe, b_pe, gamma, beta, w_proj, *,
                   out_dtype=jnp.float32):
    M, K = patches.shape
    D_pad = w_proj.shape[1]
    tm = _choose_tm(M)
    grid_m = pl.cdiv(M, tm)

    def tiled(shape):
        return pl.BlockSpec(shape, lambda i: (i, 0))

    def resident(shape):
        # constant index_map -> block stays resident across the whole grid
        return pl.BlockSpec(shape, lambda i: (0, 0))

    out_itemsize = jnp.dtype(out_dtype).itemsize
    flops = 2 * M * K * HIDDEN + 2 * M * HIDDEN * D_pad
    bytes_accessed = (M * K * 2 + K * HIDDEN * 2 + HIDDEN * D_pad * 2
                      + 3 * HIDDEN * 4 + M * D_pad * out_itemsize)
    cost = pl.CostEstimate(flops=flops, transcendentals=M,
                           bytes_accessed=bytes_accessed)

    # explicit VMEM budget (double-buffered tiles + resident weights + f32 temps),
    # clamped so it is safe on v7x's 64 MiB physical VMEM.
    vmem_bytes = (2 * tm * K * 2 + 2 * tm * D_pad * out_itemsize
                  + K * HIDDEN * 2 + HIDDEN * D_pad * 2 + 3 * HIDDEN * 4
                  + 6 * tm * HIDDEN * 4)
    vmem_limit = int(min(max(2 * vmem_bytes, 16 << 20), 48 << 20))

    return pl.pallas_call(
        _encoder_kernel,
        out_shape=jax.ShapeDtypeStruct((M, D_pad), out_dtype),
        grid=(grid_m,),
        in_specs=[
            tiled((tm, K)),              # patches
            resident((K, HIDDEN)),       # folded patch-embed weight
            resident((1, HIDDEN)),       # folded patch-embed bias
            resident((1, HIDDEN)),       # LN gamma
            resident((1, HIDDEN)),       # LN beta
            resident((HIDDEN, D_pad)),   # proj weight (transposed, lane-padded)
        ],
        out_specs=tiled((tm, D_pad)),
        compiler_params=pltpu.CompilerParams(
            dimension_semantics=("parallel",),
            vmem_limit_bytes=vmem_limit),
        cost_estimate=cost,
    )(patches, w_pe, b_pe, gamma, beta, w_proj)


class TimmEncoderPallas:
    """Synthetic stand-in for TimmEncoder: (normalize folded) patch-embed +
    final LayerNorm + Linear(768 -> dim, bias=False)."""

    HIDDEN = HIDDEN

    def __init__(self, dim: int, in_chans: int = 3, patch: int = 8, key=None,
                 out_dtype=jnp.float32):
        if key is None:
            key = jax.random.PRNGKey(0)
        k1, k2 = jax.random.split(key, 2)
        self.dim = dim
        self.in_chans = in_chans
        self.patch = patch
        self.out_dtype = out_dtype

        K = in_chans * patch * patch
        self.K = K
        self.D_pad = _round_up(dim, 128)   # lane-dense output width

        # deterministic "pretrained" patch-embed weights
        w_pe = jax.random.normal(k1, (K, self.HIDDEN), jnp.float32) * 0.02
        b_pe = jnp.zeros((self.HIDDEN,), jnp.float32)

        # timm/ImageNet transform stats, repeated per (C, p, p) flatten order.
        imnet_mean = [0.485, 0.456, 0.406]
        imnet_std = [0.229, 0.224, 0.225]
        mean_c = jnp.array((imnet_mean * ((in_chans + 2) // 3))[:in_chans], jnp.float32)
        std_c = jnp.array((imnet_std * ((in_chans + 2) // 3))[:in_chans], jnp.float32)
        mean_flat = jnp.repeat(mean_c, patch * patch)          # [K]
        istd_flat = 1.0 / jnp.repeat(std_c, patch * patch)     # [K]

        # Fold (x - mean) * istd into the patch-embed matmul:
        #   w' = diag(istd) @ w ,  b' = b - (mean * istd) @ w
        w_fold = istd_flat[:, None] * w_pe
        b_fold = b_pe - (mean_flat * istd_flat) @ w_pe
        self.w_pe = w_fold.astype(jnp.bfloat16)                # [K, 768] bf16
        self.b_pe = b_fold.reshape(1, self.HIDDEN)             # [1, 768] f32

        self.gamma = jnp.ones((1, self.HIDDEN), jnp.float32)
        self.beta = jnp.zeros((1, self.HIDDEN), jnp.float32)

        # nn.Linear(768, dim, bias=False): PyTorch weight [dim, 768]; store W^T, pad cols.
        w_proj_pt = jax.random.normal(k2, (dim, self.HIDDEN), jnp.float32) * 0.02
        w_proj = jnp.zeros((self.HIDDEN, self.D_pad), jnp.float32)
        self.w_proj = w_proj.at[:, :dim].set(w_proj_pt.T).astype(jnp.bfloat16)

    def __call__(self, x):
        # x: NCHW [B, C, H, W]
        B, C, H, W = x.shape
        p = self.patch
        assert C == self.in_chans and H % p == 0 and W % p == 0
        gh, gw = H // p, W // p
        n_tok = gh * gw
        M = B * n_tok

        # im2col glue (single XLA transpose+convert fusion, no padded zero-copy):
        # [B, C, gh, p, gw, p] -> [B, gh, gw, C, p, p] -> [M, C*p*p] bf16
        patches = (
            x.reshape(B, C, gh, p, gw, p)
            .transpose(0, 2, 4, 1, 3, 5)
            .reshape(M, C * p * p)
            .astype(jnp.bfloat16)
        )

        out = encoder_pallas(
            patches, self.w_pe, self.b_pe, self.gamma, self.beta, self.w_proj,
            out_dtype=self.out_dtype,
        )  # [M, D_pad]

        return out[:, :self.dim].reshape(B, n_tok, self.dim)


if __name__ == "__main__":
    key = jax.random.PRNGKey(0)
    k_x, k_w = jax.random.split(key)

    B, C, H, W = 2, 3, 16, 16
    dim = 32
    x = jax.random.uniform(k_x, (B, C, H, W), jnp.float32)  # NCHW, values in [0,1)

    enc = TimmEncoderPallas(dim=dim, in_chans=C, patch=8, key=k_w)
    y = enc(x)
    y = jax.block_until_ready(y)

    assert y.shape == (B, (H // 8) * (W // 8), dim), y.shape
    assert bool(jnp.all(jnp.isfinite(y.astype(jnp.float32))))
    print("KERNEL_OK")
</pallas_src>

<mosaic_0001>
module attributes {stable_mosaic.version = 11 : i64} {
  func.func @_encoder_kernel(%arg0: i32, %arg1: memref<8x192xbf16, #tpu.memory_space<vmem>>, %arg2: memref<192x768xbf16, #tpu.memory_space<vmem>>, %arg3: memref<1x768xf32, #tpu.memory_space<vmem>>, %arg4: memref<1x768xf32, #tpu.memory_space<vmem>>, %arg5: memref<1x768xf32, #tpu.memory_space<vmem>>, %arg6: memref<768x128xbf16, #tpu.memory_space<vmem>>, %arg7: memref<8x128xf32, #tpu.memory_space<vmem>>) attributes {dimension_semantics = [#tpu.dimension_semantics<parallel>], iteration_bounds = array<i64: 1>, scalar_prefetch = 0 : i64, scratch_operands = 0 : i64, tpu.core_type = #tpu.core_type<tc>, window_params = [{transform_indices = @transform_0, window_bounds = array<i64: 8, 192>}, {pipeline_mode = #tpu.pipeline_mode<synchronous>, transform_indices = @transform_1, window_bounds = array<i64: 192, 768>}, {pipeline_mode = #tpu.pipeline_mode<synchronous>, transform_indices = @transform_2, window_bounds = array<i64: 1, 768>}, {pipeline_mode = #tpu.pipeline_mode<synchronous>, transform_indices = @transform_3, window_bounds = array<i64: 1, 768>}, {pipeline_mode = #tpu.pipeline_mode<synchronous>, transform_indices = @transform_4, window_bounds = array<i64: 1, 768>}, {pipeline_mode = #tpu.pipeline_mode<synchronous>, transform_indices = @transform_5, window_bounds = array<i64: 768, 128>}, {transform_indices = @transform_6, window_bounds = array<i64: 8, 128>}]} {
    %c0 = arith.constant 0 : index
    %c0_0 = arith.constant 0 : index
    %0 = vector.load %arg1[%c0, %c0_0] : memref<8x192xbf16, #tpu.memory_space<vmem>>, vector<8x192xbf16>
    %c0_1 = arith.constant 0 : index
    %c0_2 = arith.constant 0 : index
    %1 = vector.load %arg2[%c0_1, %c0_2] : memref<192x768xbf16, #tpu.memory_space<vmem>>, vector<192x768xbf16>
    %cst = arith.constant dense<0.000000e+00> : vector<8x768xf32>
    %2 = tpu.matmul %0, %1, %cst {dimension_numbers = #tpu.dot_dimension_numbers<[1], [0], [0], [1], [0, 0, 1, 1], [], []>} : vector<8x192xbf16>, vector<192x768xbf16>, vector<8x768xf32> -> vector<8x768xf32>
    %c0_3 = arith.constant 0 : index
    %c0_4 = arith.constant 0 : index
    %3 = vector.load %arg3[%c0_3, %c0_4] : memref<1x768xf32, #tpu.memory_space<vmem>>, vector<1x768xf32>
    %4 = vector.broadcast %3 : vector<1x768xf32> to vector<8x768xf32>
    %5 = arith.addf %2, %4 : vector<8x768xf32>
    %cst_5 = arith.constant dense<0.000000e+00> : vector<8xf32>
    %6 = vector.multi_reduction <add>, %5, %cst_5 [1] : vector<8x768xf32> to vector<8xf32>
    %7 = vector.shape_cast %6 : vector<8xf32> to vector<8x1xf32>
    %cst_6 = arith.constant 0.00130208337 : f32
    %8 = vector.broadcast %cst_6 : f32 to vector<8x1xf32>
    %9 = arith.mulf %7, %8 : vector<8x1xf32>
    %10 = arith.mulf %5, %5 : vector<8x768xf32>
    %cst_7 = arith.constant dense<0.000000e+00> : vector<8xf32>
    %11 = vector.multi_reduction <add>, %10, %cst_7 [1] : vector<8x768xf32> to vector<8xf32>
    %12 = vector.shape_cast %11 : vector<8xf32> to vector<8x1xf32>
    %cst_8 = arith.constant 0.00130208337 : f32
    %13 = vector.broadcast %cst_8 : f32 to vector<8x1xf32>
    %14 = arith.mulf %12, %13 : vector<8x1xf32>
    %15 = arith.mulf %9, %9 : vector<8x1xf32>
    %16 = arith.subf %14, %15 : vector<8x1xf32>
    %17 = vector.broadcast %9 : vector<8x1xf32> to vector<8x768xf32>
    %18 = arith.subf %5, %17 : vector<8x768xf32>
    %cst_9 = arith.constant 9.99999997E-7 : f32
    %19 = vector.broadcast %cst_9 : f32 to vector<8x1xf32>
    %20 = arith.addf %16, %19 : vector<8x1xf32>
    %21 = math.rsqrt %20 : vector<8x1xf32>
    %22 = vector.broadcast %21 : vector<8x1xf32> to vector<8x768xf32>
    %23 = arith.mulf %18, %22 : vector<8x768xf32>
    %c0_10 = arith.constant 0 : index
    %c0_11 = arith.constant 0 : index
    %24 = vector.load %arg4[%c0_10, %c0_11] : memref<1x768xf32, #tpu.memory_space<vmem>>, vector<1x768xf32>
    %25 = vector.broadcast %24 : vector<1x768xf32> to vector<8x768xf32>
    %26 = arith.mulf %23, %25 : vector<8x768xf32>
    %c0_12 = arith.constant 0 : index
    %c0_13 = arith.constant 0 : index
    %27 = vector.load %arg5[%c0_12, %c0_13] : memref<1x768xf32, #tpu.memory_space<vmem>>, vector<1x768xf32>
    %28 = vector.broadcast %27 : vector<1x768xf32> to vector<8x768xf32>
    %29 = arith.addf %26, %28 : vector<8x768xf32>
    %30 = arith.truncf %29 : vector<8x768xf32> to vector<8x768xbf16>
    %c0_14 = arith.constant 0 : index
    %c0_15 = arith.constant 0 : index
    %31 = vector.load %arg6[%c0_14, %c0_15] : memref<768x128xbf16, #tpu.memory_space<vmem>>, vector<768x128xbf16>
    %cst_16 = arith.constant dense<0.000000e+00> : vector<8x128xf32>
    %32 = tpu.matmul %30, %31, %cst_16 {dimension_numbers = #tpu.dot_dimension_numbers<[1], [0], [0], [1], [0, 0, 1, 1], [], []>} : vector<8x768xbf16>, vector<768x128xbf16>, vector<8x128xf32> -> vector<8x128xf32>
    %c0_17 = arith.constant 0 : index
    %c0_18 = arith.constant 0 : index
    %33 = vector.load %arg7[%c0_17, %c0_18] : memref<8x128xf32, #tpu.memory_space<vmem>>, vector<8x128xf32>
    tpu.vector_store %arg7[%c0_17, %c0_18], %32 {strides = array<i32>} : memref<8x128xf32, #tpu.memory_space<vmem>>, vector<8x128xf32>,
    return
  }
  func.func @transform_0(%arg0: i32) -> (i32, i32) {
    %c0_i32 = arith.constant 0 : i32
    %c0_i32_0 = arith.constant 0 : i32
    return %arg0, %c0_i32 : i32, i32
  }
  func.func @transform_1(%arg0: i32) -> (i32, i32) {
    %c0_i32 = arith.constant 0 : i32
    %c0_i32_0 = arith.constant 0 : i32
    %c0_i32_1 = arith.constant 0 : i32
    return %c0_i32, %c0_i32_0 : i32, i32
  }
  func.func @transform_2(%arg0: i32) -> (i32, i32) {
    %c0_i32 = arith.constant 0 : i32
    %c0_i32_0 = arith.constant 0 : i32
    %c0_i32_1 = arith.constant 0 : i32
    return %c0_i32, %c0_i32_0 : i32, i32
  }
  func.func @transform_3(%arg0: i32) -> (i32, i32) {
    %c0_i32 = arith.constant 0 : i32
    %c0_i32_0 = arith.constant 0 : i32
    %c0_i32_1 = arith.constant 0 : i32
    return %c0_i32, %c0_i32_0 : i32, i32
  }
  func.func @transform_4(%arg0: i32) -> (i32, i32) {
    %c0_i32 = arith.constant 0 : i32
    %c0_i32_0 = arith.constant 0 : i32
    %c0_i32_1 = arith.constant 0 : i32
    return %c0_i32, %c0_i32_0 : i32, i32
  }
  func.func @transform_5(%arg0: i32) -> (i32, i32) {
    %c0_i32 = arith.constant 0 : i32
    %c0_i32_0 = arith.constant 0 : i32
    %c0_i32_1 = arith.constant 0 : i32
    return %c0_i32, %c0_i32_0 : i32, i32
  }
  func.func @transform_6(%arg0: i32) -> (i32, i32) {
    %c0_i32 = arith.constant 0 : i32
    %c0_i32_0 = arith.constant 0 : i32
    return %arg0, %c0_i32 : i32, i32
  }
}

</mosaic_0001>

<llo_original>
// kernel: tpu_custom_call.1
$region0: #{tpu_custom_call.1}
  #allocation0 [shape = 'u32[]', space=smem, size = 0x4, offset = 0x4, fixed_abs, tag = 'smem constant byte address 0x4 - core index']
  #allocation1 [shape = 'u32[144,128]{1,0:T(1,128)}', space=vmem, size = 0x12000, scoped, tag = 'internal scratch']
  %s0 = inlined_call_operand.hbm [shape: bf16[8,192], index: 0, kind: input, shape index: {}]
  %s1 = inlined_call_operand.hbm [shape: bf16[192,768], index: 1, kind: input, shape index: {}]
  %s2 = inlined_call_operand.vmem [shape: f32[1,768], index: 2, kind: input, shape index: {}]
  %s3 = inlined_call_operand.hbm [shape: f32[1,768], index: 3, kind: input, shape index: {}]
  %s4 = inlined_call_operand.vmem [shape: f32[1,768], index: 4, kind: input, shape index: {}]
  %s5 = inlined_call_operand.hbm [shape: bf16[768,128], index: 5, kind: input, shape index: {}]
  %s6 = inlined_call_operand.hbm [shape: f32[8,128], index: 6, kind: output, shape index: {}]
  %s7 = sld [smem:[#allocation0]]
  $region50: #{tpu_custom_call.1} parent=0
    _
  %s9 = ssub.s32 1, %s7
  %s10 = scalar_select 0, %s9, %s7
  $region1: #{tpu_custom_call.1} parent=0
    #allocation2 [shape = 'u8[4096]{0}', space=vmem, size = 0x1000, scoped, tag = 'input window, operand 0, single buffered']
    #allocation3 [shape = 's32[1]{0}', space=sflag, size = 0x4, scoped, tag = 'scoped memory for tpu_custom_call.1']
    #allocation4 [shape = 's32[1]{0}', space=sflag, size = 0x4, scoped, tag = 'scoped memory for tpu_custom_call.1']
    #allocation5 [shape = 'u8[294912]{0}', space=vmem, size = 0x48000, scoped, tag = 'input window, operand 1, single buffered']
    #allocation6 [shape = 's32[1]{0}', space=sflag, size = 0x4, scoped, tag = 'scoped memory for tpu_custom_call.1']
    #allocation7 [shape = 'u8[3072]{0}', space=vmem, size = 0xc00, scoped, tag = 'input window, operand 3, single buffered']
    #allocation8 [shape = 'u8[196608]{0}', space=vmem, size = 0x30000, scoped, tag = 'input window, operand 5, single buffered']
    #allocation9 [shape = 's32[1]{0}', space=sflag, size = 0x4, scoped, tag = 'scoped memory for tpu_custom_call.1']
    #allocation10 [shape = 'u8[4096]{0}', space=vmem, size = 0x1000, scoped, tag = 'output window, operand 0, single buffered']
    %11 = vsyncpa [#allocation3], 0
    %12 = vsyncpa [#allocation6], 0
    %13 = vsyncpa [#allocation9], 0
    %14 = vsyncpa [#allocation4], 0
    // Predicated region
    $region2: #{tpu_custom_call.1} parent=1 // pred_check
      _
    $region3: #{tpu_custom_call.1} parent=1 // pred_check_branch
      %16 = sbr.rel (0) target = $region5
    $region4: #{tpu_custom_call.1} parent=1 // pred_region
      %s18 = ssub.s32 128, 128
      %19 = vsyncadd [#allocation3], %s18
      %s21 = sshll.u32 [#allocation2], 4
      %s22 = int_to_ptr.vmem [resolvable:$true] %s21
      %24 = dma.hbm_to_vmem [thread:$0]  %s0, 128, %s22, [#allocation3]
    $region5: #{tpu_custom_call.1} parent=1 // pred_fallthru
      _
    // Predicated region
    $region6: #{tpu_custom_call.1} parent=1 // pred_check
      _
    $region7: #{tpu_custom_call.1} parent=1 // pred_check_branch
      %26 = sbr.rel (0) target = $region9
    $region8: #{tpu_custom_call.1} parent=1 // pred_region
      %s28 = ssub.s32 9216, 9216
      %29 = vsyncadd [#allocation6], %s28
      %s30 = sshll.u32 [#allocation5], 4
      %s31 = int_to_ptr.vmem [resolvable:$true] %s30
      %36 = dma.hbm_to_vmem [thread:$0]  %s1, 9216, %s31, [#allocation6], 384, 384, 24
    $region9: #{tpu_custom_call.1} parent=1 // pred_fallthru
      _
    // Predicated region
    $region10: #{tpu_custom_call.1} parent=1 // pred_check
      _
    $region11: #{tpu_custom_call.1} parent=1 // pred_check_branch
      %38 = sbr.rel (0) target = $region13
    $region12: #{tpu_custom_call.1} parent=1 // pred_region
      _
    $region13: #{tpu_custom_call.1} parent=1 // pred_fallthru
      _
    // Predicated region
    $region14: #{tpu_custom_call.1} parent=1 // pred_check
      _
    $region15: #{tpu_custom_call.1} parent=1 // pred_check_branch
      %40 = sbr.rel (0) target = $region17
    $region16: #{tpu_custom_call.1} parent=1 // pred_region
      %s42 = ssub.s32 96, 96
      %43 = vsyncadd [#allocation6], %s42
      %s45 = sshll.u32 [#allocation7], 4
      %s46 = int_to_ptr.vmem [resolvable:$true] %s45
      %48 = dma.hbm_to_vmem [thread:$0]  %s3, 96, %s46, [#allocation6]
    $region17: #{tpu_custom_call.1} parent=1 // pred_fallthru
      _
    // Predicated region
    $region18: #{tpu_custom_call.1} parent=1 // pred_check
      _
    $region19: #{tpu_custom_call.1} parent=1 // pred_check_branch
      %50 = sbr.rel (0) target = $region21
    $region20: #{tpu_custom_call.1} parent=1 // pred_region
      _
    $region21: #{tpu_custom_call.1} parent=1 // pred_fallthru
      _
    // Predicated region
    $region22: #{tpu_custom_call.1} parent=1 // pred_check
      _
    $region23: #{tpu_custom_call.1} parent=1 // pred_check_branch
      %52 = sbr.rel (0) target = $region25
    $region24: #{tpu_custom_call.1} parent=1 // pred_region
      %s54 = ssub.s32 6144, 6144
      %55 = vsyncadd [#allocation9], %s54
      %s56 = sshll.u32 [#allocation8], 4
      %s57 = int_to_ptr.vmem [resolvable:$true] %s56
      %62 = dma.hbm_to_vmem [thread:$0]  %s5, 6144, %s57, [#allocation9], 64, 64, 4
    $region25: #{tpu_custom_call.1} parent=1 // pred_fallthru
      _
    // Predicated region
    $region26: #{tpu_custom_call.1} parent=1 // pred_check
      _
    $region27: #{tpu_custom_call.1} parent=1 // pred_check_branch
      %64 = sbr.rel (0) target = $region29
    $region28: #{tpu_custom_call.1} parent=1 // pred_region
      %65 = dma.done [#allocation3], 128
    $region29: #{tpu_custom_call.1} parent=1 // pred_fallthru
      _
    // Predicated region
    $region30: #{tpu_custom_call.1} parent=1 // pred_check
      _
    $region31: #{tpu_custom_call.1} parent=1 // pred_check_branch
      %67 = sbr.rel (0) target = $region33
    $region32: #{tpu_custom_call.1} parent=1 // pred_region
      %68 = dma.done [#allocation6], 9216
    $region33: #{tpu_custom_call.1} parent=1 // pred_fallthru
      _
    // Predicated region
    $region34: #{tpu_custom_call.1} parent=1 // pred_check
      _
    $region35: #{tpu_custom_call.1} parent=1 // pred_check_branch
      %70 = sbr.rel (0) target = $region37
    $region36: #{tpu_custom_call.1} parent=1 // pred_region
      %71 = dma.done [#allocation6], 96
    $region37: #{tpu_custom_call.1} parent=1 // pred_fallthru
      _
    // Predicated region
    $region38: #{tpu_custom_call.1} parent=1 // pred_check
      _
    $region39: #{tpu_custom_call.1} parent=1 // pred_check_branch
      %73 = sbr.rel (0) target = $region41
    $region40: #{tpu_custom_call.1} parent=1 // pred_region
      %74 = dma.done [#allocation9], 6144
    $region41: #{tpu_custom_call.1} parent=1 // pred_fallthru
      _
    %v76 = vld [vmem:[#allocation2] sm:$0xff]
    %v77 = vld [vmem:[#allocation5] sm:$0xff]
    %v78 = vld [vmem:[#allocation5 + $0x8] sm:$0xff]
    %v79 = vld [vmem:[#allocation5 + $0x10] sm:$0xff]
    %v80 = vld [vmem:[#allocation5 + $0x18] sm:$0xff]
    %v81 = vld [vmem:[#allocation5 + $0x20] sm:$0xff]
    %v82 = vld [vmem:[#allocation5 + $0x28] sm:$0xff]
    %v83 = vld [vmem:[#allocation5 + $0x30] sm:$0xff]
    %v84 = vld [vmem:[#allocation5 + $0x38] sm:$0xff]
    %v85 = vld [vmem:[#allocation5 + $0x40] sm:$0xff]
    %v86 = vld [vmem:[#allocation5 + $0x48] sm:$0xff]
    %v87 = vld [vmem:[#allocation5 + $0x50] sm:$0xff]
    %v88 = vld [vmem:[#allocation5 + $0x58] sm:$0xff]
    %v89 = vld [vmem:[#allocation5 + $0x60] sm:$0xff]
    %v90 = vld [vmem:[#allocation5 + $0x68] sm:$0xff]
    %v91 = vld [vmem:[#allocation5 + $0x70] sm:$0xff]
    %v92 = vld [vmem:[#allocation5 + $0x78] sm:$0xff]
    %v93 = vld [vmem:[#allocation5 + $0x80] sm:$0xff]
    %v94 = vld [vmem:[#allocation5 + $0x88] sm:$0xff]
    %v95 = vld [vmem:[#allocation5 + $0x90] sm:$0xff]
    %v96 = vld [vmem:[#allocation5 + $0x98] sm:$0xff]
    %v97 = vld [vmem:[#allocation5 + $0xa0] sm:$0xff]
    %v98 = vld [vmem:[#allocation5 + $0xa8] sm:$0xff]
    %v99 = vld [vmem:[#allocation5 + $0xb0] sm:$0xff]
    %v100 = vld [vmem:[#allocation5 + $0xb8] sm:$0xff]
    %v101 = vld [vmem:[#allocation5 + $0xc0] sm:$0xff]
    %v102 = vld [vmem:[#allocation5 + $0xc8] sm:$0xff]
    %v103 = vld [vmem:[#allocation5 + $0xd0] sm:$0xff]
    %v104 = vld [vmem:[#allocation5 + $0xd8] sm:$0xff]
    %v105 = vld [vmem:[#allocation5 + $0xe0] sm:$0xff]
    %v106 = vld [vmem:[#allocation5 + $0xe8] sm:$0xff]
    %v107 = vld [vmem:[#allocation5 + $0xf0] sm:$0xff]
    %v108 = vld [vmem:[#allocation5 + $0xf8] sm:$0xff]
    %v109 = vld [vmem:[#allocation5 + $0x100] sm:$0xff]
    %v110 = vld [vmem:[#allocation5 + $0x108] sm:$0xff]
    %v111 = vld [vmem:[#allocation5 + $0x110] sm:$0xff]
    %v112 = vld [vmem:[#allocation5 + $0x118] sm:$0xff]
    %v113 = vld [vmem:[#allocation5 + $0x120] sm:$0xff]
    %v114 = vld [vmem:[#allocation5 + $0x128] sm:$0xff]
    %v115 = vld [vmem:[#allocation5 + $0x130] sm:$0xff]
    %v116 = vld [vmem:[#allocation5 + $0x138] sm:$0xff]
    %v117 = vld [vmem:[#allocation5 + $0x140] sm:$0xff]
    %v118 = vld [vmem:[#allocation5 + $0x148] sm:$0xff]
    %v119 = vld [vmem:[#allocation5 + $0x150] sm:$0xff]
    %v120 = vld [vmem:[#allocation5 + $0x158] sm:$0xff]
    %v121 = vld [vmem:[#allocation5 + $0x160] sm:$0xff]
    %v122 = vld [vmem:[#allocation5 + $0x168] sm:$0xff]
    %v123 = vld [vmem:[#allocation5 + $0x170] sm:$0xff]
    %v124 = vld [vmem:[#allocation5 + $0x178] sm:$0xff]
    %v125 = vld [vmem:[#allocation5 + $0x180] sm:$0xff]
    %v126 = vld [vmem:[#allocation5 + $0x188] sm:$0xff]
    %v127 = vld [vmem:[#allocation5 + $0x190] sm:$0xff]
    %v128 = vld [vmem:[#allocation5 + $0x198] sm:$0xff]
    %v129 = vld [vmem:[#allocation5 + $0x1a0] sm:$0xff]
    %v130 = vld [vmem:[#allocation5 + $0x1a8] sm:$0xff]
    %v131 = vld [vmem:[#allocation5 + $0x1b0] sm:$0xff]
    %v132 = vld [vmem:[#allocation5 + $0x1b8] sm:$0xff]
    %v133 = vld [vmem:[#allocation5 + $0x1c0] sm:$0xff]
    %v134 = vld [vmem:[#allocation5 + $0x1c8] sm:$0xff]
    %v135 = vld [vmem:[#allocation5 + $0x1d0] sm:$0xff]
    %v136 = vld [vmem:[#allocation5 + $0x1d8] sm:$0xff]
    %v137 = vld [vmem:[#allocation5 + $0x1e0] sm:$0xff]
    %v138 = vld [vmem:[#allocation5 + $0x1e8] sm:$0xff]
    %v139 = vld [vmem:[#allocation5 + $0x1f0] sm:$0xff]
    %v140 = vld [vmem:[#allocation5 + $0x1f8] sm:$0xff]
    %v141 = vld [vmem:[#allocation5 + $0x200] sm:$0xff]
    %v142 = vld [vmem:[#allocation5 + $0x208] sm:$0xff]
    %v143 = vld [vmem:[#allocation5 + $0x210] sm:$0xff]
    %v144 = vld [vmem:[#allocation5 + $0x218] sm:$0xff]
    %v145 = vld [vmem:[#allocation5 + $0x220] sm:$0xff]
    %v146 = vld [vmem:[#allocation5 + $0x228] sm:$0xff]
    %v147 = vld [vmem:[#allocation5 + $0x230] sm:$0xff]
    %v148 = vld [vmem:[#allocation5 + $0x238] sm:$0xff]
    %v149 = vld [vmem:[%s2] sm:$0x3f]
    %v151 = vlaneseq
    %v152 = vshrl.u32 %v151, 7
    %v153 = vsub.s32 0, %v152
    %v154 = vrot.slane %v149, %v153
    %v155 = vlaneseq
    %v156 = vshrl.u32 %v155, 7
    %v157 = vsub.s32 1, %v156
    %v158 = vrot.slane %v149, %v157
    %v159 = vlaneseq
    %v160 = vshrl.u32 %v159, 7
    %v161 = vsub.s32 2, %v160
    %v162 = vrot.slane %v149, %v161
    %v163 = vlaneseq
    %v164 = vshrl.u32 %v163, 7
    %v165 = vsub.s32 3, %v164
    %v166 = vrot.slane %v149, %v165
    %v167 = vlaneseq
    %v168 = vshrl.u32 %v167, 7
    %v169 = vsub.s32 4, %v168
    %v170 = vrot.slane %v149, %v169
    %v171 = vlaneseq
    %v172 = vshrl.u32 %v171, 7
    %v173 = vsub.s32 5, %v172
    %v174 = vrot.slane %v149, %v173
    %v182 = vunpack.c.l.b16 %v76
    %v183 = vunpack.c.h.b16 %v76
    %v184 = vpack.c.b16 %v182, %v182
    %v185 = vpack.c.b16 %v183, %v183
    %v259 = vunpack.c.l.b16 %v77
    %v260 = vunpack.c.h.b16 %v77
    %v261 = vunpack.c.l.b16 %v78
    %v262 = vunpack.c.h.b16 %v78
    %v263 = vunpack.c.l.b16 %v79
    %v264 = vunpack.c.h.b16 %v79
    %v265 = vunpack.c.l.b16 %v80
    %v266 = vunpack.c.h.b16 %v80
    %v267 = vunpack.c.l.b16 %v81
    %v268 = vunpack.c.h.b16 %v81
    %v269 = vunpack.c.l.b16 %v82
    %v270 = vunpack.c.h.b16 %v82
    %v271 = vunpack.c.l.b16 %v83
    %v272 = vunpack.c.h.b16 %v83
    %v273 = vunpack.c.l.b16 %v84
    %v274 = vunpack.c.h.b16 %v84
    %v275 = vunpack.c.l.b16 %v85
    %v276 = vunpack.c.h.b16 %v85
    %v277 = vunpack.c.l.b16 %v86
    %v278 = vunpack.c.h.b16 %v86
    %v279 = vunpack.c.l.b16 %v87
    %v280 = vunpack.c.h.b16 %v87
    %v281 = vunpack.c.l.b16 %v88
    %v282 = vunpack.c.h.b16 %v88
    %v283 = vunpack.c.l.b16 %v89
    %v284 = vunpack.c.h.b16 %v89
    %v285 = vunpack.c.l.b16 %v90
    %v286 = vunpack.c.h.b16 %v90
    %v287 = vunpack.c.l.b16 %v91
    %v288 = vunpack.c.h.b16 %v91
    %v289 = vunpack.c.l.b16 %v92
    %v290 = vunpack.c.h.b16 %v92
    %v291 = vunpack.c.l.b16 %v93
    %v292 = vunpack.c.h.b16 %v93
    %v293 = vunpack.c.l.b16 %v94
    %v294 = vunpack.c.h.b16 %v94
    %v295 = vunpack.c.l.b16 %v95
    %v296 = vunpack.c.h.b16 %v95
    %v297 = vunpack.c.l.b16 %v96
    %v298 = vunpack.c.h.b16 %v96
    %v299 = vunpack.c.l.b16 %v97
    %v300 = vunpack.c.h.b16 %v97
    %v301 = vunpack.c.l.b16 %v98
    %v302 = vunpack.c.h.b16 %v98
    %v303 = vunpack.c.l.b16 %v99
    %v304 = vunpack.c.h.b16 %v99
    %v305 = vunpack.c.l.b16 %v100
    %v306 = vunpack.c.h.b16 %v100
    %v307 = vunpack.c.l.b16 %v101
    %v308 = vunpack.c.h.b16 %v101
    %v309 = vunpack.c.l.b16 %v102
    %v310 = vunpack.c.h.b16 %v102
    %v311 = vunpack.c.l.b16 %v103
    %v312 = vunpack.c.h.b16 %v103
    %v313 = vunpack.c.l.b16 %v104
    %v314 = vunpack.c.h.b16 %v104
    %v315 = vunpack.c.l.b16 %v105
    %v316 = vunpack.c.h.b16 %v105
    %v317 = vunpack.c.l.b16 %v106
    %v318 = vunpack.c.h.b16 %v106
    %v319 = vunpack.c.l.b16 %v107
    %v320 = vunpack.c.h.b16 %v107
    %v321 = vunpack.c.l.b16 %v108
    %v322 = vunpack.c.h.b16 %v108
    %v323 = vunpack.c.l.b16 %v109
    %v324 = vunpack.c.h.b16 %v109
    %v325 = vunpack.c.l.b16 %v110
    %v326 = vunpack.c.h.b16 %v110
    %v327 = vunpack.c.l.b16 %v111
    %v328 = vunpack.c.h.b16 %v111
    %v329 = vunpack.c.l.b16 %v112
    %v330 = vunpack.c.h.b16 %v112
    %v331 = vunpack.c.l.b16 %v113
    %v332 = vunpack.c.h.b16 %v113
    %v333 = vunpack.c.l.b16 %v114
    %v334 = vunpack.c.h.b16 %v114
    %v335 = vunpack.c.l.b16 %v115
    %v336 = vunpack.c.h.b16 %v115
    %v337 = vunpack.c.l.b16 %v116
    %v338 = vunpack.c.h.b16 %v116
    %v339 = vunpack.c.l.b16 %v117
    %v340 = vunpack.c.h.b16 %v117
    %v341 = vunpack.c.l.b16 %v118
    %v342 = vunpack.c.h.b16 %v118
    %v343 = vunpack.c.l.b16 %v119
    %v344 = vunpack.c.h.b16 %v119
    %v345 = vunpack.c.l.b16 %v120
    %v346 = vunpack.c.h.b16 %v120
    %v347 = vunpack.c.l.b16 %v121
    %v348 = vunpack.c.h.b16 %v121
    %v349 = vunpack.c.l.b16 %v122
    %v350 = vunpack.c.h.b16 %v122
    %v351 = vunpack.c.l.b16 %v123
    %v352 = vunpack.c.h.b16 %v123
    %v353 = vunpack.c.l.b16 %v124
    %v354 = vunpack.c.h.b16 %v124
    %v355 = vunpack.c.l.b16 %v125
    %v356 = vunpack.c.h.b16 %v125
    %v357 = vunpack.c.l.b16 %v126
    %v358 = vunpack.c.h.b16 %v126
    %v359 = vunpack.c.l.b16 %v127
    %v360 = vunpack.c.h.b16 %v127
    %v361 = vunpack.c.l.b16 %v128
    %v362 = vunpack.c.h.b16 %v128
    %v363 = vunpack.c.l.b16 %v129
    %v364 = vunpack.c.h.b16 %v129
    %v365 = vunpack.c.l.b16 %v130
    %v366 = vunpack.c.h.b16 %v130
    %v367 = vunpack.c.l.b16 %v131
    %v368 = vunpack.c.h.b16 %v131
    %v369 = vunpack.c.l.b16 %v132
    %v370 = vunpack.c.h.b16 %v132
    %v371 = vunpack.c.l.b16 %v133
    %v372 = vunpack.c.h.b16 %v133
    %v373 = vunpack.c.l.b16 %v134
    %v374 = vunpack.c.h.b16 %v134
    %v375 = vunpack.c.l.b16 %v135
    %v376 = vunpack.c.h.b16 %v135
    %v377 = vunpack.c.l.b16 %v136
    %v378 = vunpack.c.h.b16 %v136
    %v379 = vunpack.c.l.b16 %v137
    %v380 = vunpack.c.h.b16 %v137
    %v381 = vunpack.c.l.b16 %v138
    %v382 = vunpack.c.h.b16 %v138
    %v383 = vunpack.c.l.b16 %v139
    %v384 = vunpack.c.h.b16 %v139
    %v385 = vunpack.c.l.b16 %v140
    %v386 = vunpack.c.h.b16 %v140
    %v387 = vunpack.c.l.b16 %v141
    %v388 = vunpack.c.h.b16 %v141
    %v389 = vunpack.c.l.b16 %v142
    %v390 = vunpack.c.h.b16 %v142
    %v391 = vunpack.c.l.b16 %v143
    %v392 = vunpack.c.h.b16 %v143
    %v393 = vunpack.c.l.b16 %v144
    %v394 = vunpack.c.h.b16 %v144
    %v395 = vunpack.c.l.b16 %v145
    %v396 = vunpack.c.h.b16 %v145
    %v397 = vunpack.c.l.b16 %v146
    %v398 = vunpack.c.h.b16 %v146
    %v399 = vunpack.c.l.b16 %v147
    %v400 = vunpack.c.h.b16 %v147
    %v401 = vunpack.c.l.b16 %v148
    %v402 = vunpack.c.h.b16 %v148
    %v403 = vpack.c.b16 %v265, %v259
    %v404 = vpack.c.b16 %v266, %v260
    %v405 = vpack.c.b16 %v267, %v261
    %v406 = vpack.c.b16 %v268, %v262
    %v407 = vpack.c.b16 %v269, %v263
    %v408 = vpack.c.b16 %v270, %v264
    %v409 = vpack.c.b16 %v277, %v271
    %v410 = vpack.c.b16 %v278, %v272
    %v411 = vpack.c.b16 %v279, %v273
    %v412 = vpack.c.b16 %v280, %v274
    %v413 = vpack.c.b16 %v281, %v275
    %v414 = vpack.c.b16 %v282, %v276
    %v415 = vpack.c.b16 %v289, %v283
    %v416 = vpack.c.b16 %v290, %v284
    %v417 = vpack.c.b16 %v291, %v285
    %v418 = vpack.c.b16 %v292, %v286
    %v419 = vpack.c.b16 %v293, %v287
    %v420 = vpack.c.b16 %v294, %v288
    %v421 = vpack.c.b16 %v301, %v295
    %v422 = vpack.c.b16 %v302, %v296
    %v423 = vpack.c.b16 %v303, %v297
    %v424 = vpack.c.b16 %v304, %v298
    %v425 = vpack.c.b16 %v305, %v299
    %v426 = vpack.c.b16 %v306, %v300
    %v427 = vpack.c.b16 %v313, %v307
    %v428 = vpack.c.b16 %v314, %v308
    %v429 = vpack.c.b16 %v315, %v309
    %v430 = vpack.c.b16 %v316, %v310
    %v431 = vpack.c.b16 %v317, %v311
    %v432 = vpack.c.b16 %v318, %v312
    %v433 = vpack.c.b16 %v325, %v319
    %v434 = vpack.c.b16 %v326, %v320
    %v435 = vpack.c.b16 %v327, %v321
    %v436 = vpack.c.b16 %v328, %v322
    %v437 = vpack.c.b16 %v329, %v323
    %v438 = vpack.c.b16 %v330, %v324
    %v439 = vpack.c.b16 %v337, %v331
    %v440 = vpack.c.b16 %v338, %v332
    %v441 = vpack.c.b16 %v339, %v333
    %v442 = vpack.c.b16 %v340, %v334
    %v443 = vpack.c.b16 %v341, %v335
    %v444 = vpack.c.b16 %v342, %v336
    %v445 = vpack.c.b16 %v349, %v343
    %v446 = vpack.c.b16 %v350, %v344
    %v447 = vpack.c.b16 %v351, %v345
    %v448 = vpack.c.b16 %v352, %v346
    %v449 = vpack.c.b16 %v353, %v347
    %v450 = vpack.c.b16 %v354, %v348
    %v451 = vpack.c.b16 %v361, %v355
    %v452 = vpack.c.b16 %v362, %v356
    %v453 = vpack.c.b16 %v363, %v357
    %v454 = vpack.c.b16 %v364, %v358
    %v455 = vpack.c.b16 %v365, %v359
    %v456 = vpack.c.b16 %v366, %v360
    %v457 = vpack.c.b16 %v373, %v367
    %v458 = vpack.c.b16 %v374, %v368
    %v459 = vpack.c.b16 %v375, %v369
    %v460 = vpack.c.b16 %v376, %v370
    %v461 = vpack.c.b16 %v377, %v371
    %v462 = vpack.c.b16 %v378, %v372
    %v463 = vpack.c.b16 %v385, %v379
    %v464 = vpack.c.b16 %v386, %v380
    %v465 = vpack.c.b16 %v387, %v381
    %v466 = vpack.c.b16 %v388, %v382
    %v467 = vpack.c.b16 %v389, %v383
    %v468 = vpack.c.b16 %v390, %v384
    %v469 = vpack.c.b16 %v397, %v391
    %v470 = vpack.c.b16 %v398, %v392
    %v471 = vpack.c.b16 %v399, %v393
    %v472 = vpack.c.b16 %v400, %v394
    %v473 = vpack.c.b16 %v401, %v395
    %v474 = vpack.c.b16 %v402, %v396
    %vm547 = vcmask 523264
    %v549 = vsel %vm547, %v185, 0
    %551 = vmatprep.subr.bf16.mxu0 %v404
    %552 = vmatpush1.bf16.msra.mxu0 %v403
    %553 = vmatprep.subr.bf16.mxu0 %v410
    %554 = vmatpush1.bf16.msra.mxu0 %v409
    %555 = vmatprep.subr.bf16.mxu0 %v416
    %556 = vmatpush1.bf16.msra.mxu0 %v415
    %557 = vmatprep.subr.bf16.mxu0 %v422
    %558 = vmatpush1.bf16.msra.mxu0 %v421
    %559 = vmatprep.subr.bf16.mxu0 %v428
    %560 = vmatpush1.bf16.msra.mxu0 %v427
    %561 = vmatprep.subr.bf16.mxu0 %v434
    %562 = vmatpush1.bf16.msra.mxu0 %v433
    %563 = vmatprep.subr.bf16.mxu0 %v440
    %564 = vmatpush1.bf16.msra.mxu0 %v439
    %565 = vmatprep.subr.bf16.mxu0 %v446
    %566 = vmatpush1.bf16.msra.mxu0 %v445
    %567 = vmatprep.subr.bf16.mxu0 %v452
    %568 = vmatpush1.bf16.msra.mxu0 %v451
    %569 = vmatprep.subr.bf16.mxu0 %v458
    %570 = vmatpush1.bf16.msra.mxu0 %v457
    %571 = vmatprep.subr.bf16.mxu0 %v464
    %572 = vmatpush1.bf16.msra.mxu0 %v463
    %573 = vmatprep.subr.bf16.mxu0 %v470
    %574 = vmatpush1.bf16.msra.mxu0 %v469
    %575 = vmatprep.subr.bf16.mxu0 0
    %576 = vmatpush1.bf16.msra.mxu0 0
    %577 = vmatprep.subr.bf16.mxu0 0
    %578 = vmatpush1.bf16.msra.mxu0 0
    %579 = vmatprep.subr.bf16.mxu0 0
    %580 = vmatpush1.bf16.msra.mxu0 0
    %581 = vmatprep.subr.bf16.mxu0 0
    %582 = vmatpush1.bf16.msra.mxu0 0
    %583 = vmatprep.mubr.bf16.mxu0 %v549
    %584 = vmatmul.mubr.bf16.gmra.mrb[0].mxu0 %v184
    %v585 = vpop.f32.mrb[0].mxu0
    %v586 = vadd.f32 %v154, %v585
    %v587 = vpop.f32.mrb[0].mxu0
    %v588 = vadd.f32 %v158, %v587
    %v589 = vpop.f32.mrb[0].mxu0
    %v590 = vpop.f32.mrb[0].mxu0
    %591 = vdwg.mxu0
    %592 = vmatprep.subr.bf16.mxu0 %v406
    %593 = vmatpush1.bf16.msra.mxu0 %v405
    %594 = vmatprep.subr.bf16.mxu0 %v412
    %595 = vmatpush1.bf16.msra.mxu0 %v411
    %596 = vmatprep.subr.bf16.mxu0 %v418
    %597 = vmatpush1.bf16.msra.mxu0 %v417
    %598 = vmatprep.subr.bf16.mxu0 %v424
    %599 = vmatpush1.bf16.msra.mxu0 %v423
    %600 = vmatprep.subr.bf16.mxu0 %v430
    %601 = vmatpush1.bf16.msra.mxu0 %v429
    %602 = vmatprep.subr.bf16.mxu0 %v436
    %603 = vmatpush1.bf16.msra.mxu0 %v435
    %604 = vmatprep.subr.bf16.mxu0 %v442
    %605 = vmatpush1.bf16.msra.mxu0 %v441
    %606 = vmatprep.subr.bf16.mxu0 %v448
    %607 = vmatpush1.bf16.msra.mxu0 %v447
    %608 = vmatprep.subr.bf16.mxu0 %v454
    %609 = vmatpush1.bf16.msra.mxu0 %v453
    %610 = vmatprep.subr.bf16.mxu0 %v460
    %611 = vmatpush1.bf16.msra.mxu0 %v459
    %612 = vmatprep.subr.bf16.mxu0 %v466
    %613 = vmatpush1.bf16.msra.mxu0 %v465
    %614 = vmatprep.subr.bf16.mxu0 %v472
    %615 = vmatpush1.bf16.msra.mxu0 %v471
    %616 = vmatprep.subr.bf16.mxu0 0
    %617 = vmatpush1.bf16.msra.mxu0 0
    %618 = vmatprep.subr.bf16.mxu0 0
    %619 = vmatpush1.bf16.msra.mxu0 0
    %620 = vmatprep.subr.bf16.mxu0 0
    %621 = vmatpush1.bf16.msra.mxu0 0
    %622 = vmatprep.subr.bf16.mxu0 0
    %623 = vmatpush1.bf16.msra.mxu0 0
    %624 = vmatprep.mubr.bf16.mxu0 %v549
    %625 = vmatmul.mubr.bf16.gmra.mrb[0].mxu0 %v184
    %v626 = vpop.f32.mrb[0].mxu0
    %v627 = vadd.f32 %v162, %v626
    %v628 = vpop.f32.mrb[0].mxu0
    %v629 = vadd.f32 %v166, %v628
    %v630 = vpop.f32.mrb[0].mxu0
    %v631 = vpop.f32.mrb[0].mxu0
    %632 = vdwg.mxu0
    %633 = vmatprep.subr.bf16.mxu0 %v408
    %634 = vmatpush1.bf16.msra.mxu0 %v407
    %635 = vmatprep.subr.bf16.mxu0 %v414
    %636 = vmatpush1.bf16.msra.mxu0 %v413
    %637 = vmatprep.subr.bf16.mxu0 %v420
    %638 = vmatpush1.bf16.msra.mxu0 %v419
    %639 = vmatprep.subr.bf16.mxu0 %v426
    %640 = vmatpush1.bf16.msra.mxu0 %v425
    %641 = vmatprep.subr.bf16.mxu0 %v432
    %642 = vmatpush1.bf16.msra.mxu0 %v431
    %643 = vmatprep.subr.bf16.mxu0 %v438
    %644 = vmatpush1.bf16.msra.mxu0 %v437
    %645 = vmatprep.subr.bf16.mxu0 %v444
    %646 = vmatpush1.bf16.msra.mxu0 %v443
    %647 = vmatprep.subr.bf16.mxu0 %v450
    %648 = vmatpush1.bf16.msra.mxu0 %v449
    %649 = vmatprep.subr.bf16.mxu0 %v456
    %650 = vmatpush1.bf16.msra.mxu0 %v455
    %651 = vmatprep.subr.bf16.mxu0 %v462
    %652 = vmatpush1.bf16.msra.mxu0 %v461
    %653 = vmatprep.subr.bf16.mxu0 %v468
    %654 = vmatpush1.bf16.msra.mxu0 %v467
    %655 = vmatprep.subr.bf16.mxu0 %v474
    %656 = vmatpush1.bf16.msra.mxu0 %v473
    %657 = vmatprep.subr.bf16.mxu0 0
    %658 = vmatpush1.bf16.msra.mxu0 0
    %659 = vmatprep.subr.bf16.mxu0 0
    %660 = vmatpush1.bf16.msra.mxu0 0
    %661 = vmatprep.subr.bf16.mxu0 0
    %662 = vmatpush1.bf16.msra.mxu0 0
    %663 = vmatprep.subr.bf16.mxu0 0
    %664 = vmatpush1.bf16.msra.mxu0 0
    %665 = vmatprep.mubr.bf16.mxu0 %v549
    %666 = vmatmul.mubr.bf16.gmra.mrb[0].mxu0 %v184
    %v667 = vpop.f32.mrb[0].mxu0
    %v668 = vadd.f32 %v170, %v667
    %v669 = vpop.f32.mrb[0].mxu0
    %v670 = vadd.f32 %v174, %v669
    %v671 = vpop.f32.mrb[0].mxu0
    %v672 = vpop.f32.mrb[0].mxu0
    %673 = vdwg.mxu0
    %v674 = vadd.f32 %v586, %v588
    %v675 = vadd.f32 %v674, %v627
    %v676 = vadd.f32 %v675, %v629
    %v677 = vadd.f32 %v676, %v668
    %v678 = vadd.f32 %v677, %v670
    %679 = vadd.xlane.f32.xlu0 %v678
    %v680 = vpop.xlane.xlu0 %679
    %v681 = vmul.f32 %v680, 0.0013020834
    %v682 = vmul.f32 %v586, %v586
    %v683 = vmul.f32 %v588, %v588
    %v684 = vmul.f32 %v627, %v627
    %v685 = vmul.f32 %v629, %v629
    %v686 = vmul.f32 %v668, %v668
    %v687 = vmul.f32 %v670, %v670
    %v688 = vadd.f32 %v682, %v683
    %v689 = vadd.f32 %v688, %v684
    %v690 = vadd.f32 %v689, %v685
    %v691 = vadd.f32 %v690, %v686
    %v692 = vadd.f32 %v691, %v687
    %693 = vadd.xlane.f32.xlu0 %v692
    %v694 = vpop.xlane.xlu0 %693
    %v695 = vmul.f32 %v694, 0.0013020834
    %v696 = vmul.f32 %v681, %v681
    %v697 = vsub.f32 %v695, %v696
    %v698 = vsub.f32 %v586, %v681
    %v699 = vsub.f32 %v588, %v681
    %v700 = vsub.f32 %v627, %v681
    %v701 = vsub.f32 %v629, %v681
    %v702 = vsub.f32 %v668, %v681
    %v703 = vsub.f32 %v670, %v681
    %v704 = vadd.f32 %v697, 1e-06
    %v705 = vrsqrt.pop %v704
    %v706 = vmul.f32 %v698, %v705
    %v707 = vmul.f32 %v699, %v705
    %v708 = vmul.f32 %v700, %v705
    %v709 = vmul.f32 %v701, %v705
    %v710 = vmul.f32 %v702, %v705
    %v711 = vmul.f32 %v703, %v705
    %v712 = vld [vmem:[#allocation7] sm:$0x3f]
    %v714 = vlaneseq
    %v715 = vshrl.u32 %v714, 7
    %v716 = vsub.s32 0, %v715
    %v717 = vrot.slane %v712, %v716
    %v718 = vlaneseq
    %v719 = vshrl.u32 %v718, 7
    %v720 = vsub.s32 1, %v719
    %v721 = vrot.slane %v712, %v720
    %v722 = vlaneseq
    %v723 = vshrl.u32 %v722, 7
    %v724 = vsub.s32 2, %v723
    %v725 = vrot.slane %v712, %v724
    %v726 = vlaneseq
    %v727 = vshrl.u32 %v726, 7
    %v728 = vsub.s32 3, %v727
    %v729 = vrot.slane %v712, %v728
    %v730 = vlaneseq
    %v731 = vshrl.u32 %v730, 7
    %v732 = vsub.s32 4, %v731
    %v733 = vrot.slane %v712, %v732
    %v734 = vlaneseq
    %v735 = vshrl.u32 %v734, 7
    %v736 = vsub.s32 5, %v735
    %v737 = vrot.slane %v712, %v736
    %v744 = vmul.f32 %v706, %v717
    %v745 = vmul.f32 %v707, %v721
    %v746 = vmul.f32 %v708, %v725
    %v747 = vmul.f32 %v709, %v729
    %v748 = vmul.f32 %v710, %v733
    %v749 = vmul.f32 %v711, %v737
    %v750 = vld [vmem:[%s4] sm:$0x3f]
    %v752 = vlaneseq
    %v753 = vshrl.u32 %v752, 7
    %v754 = vsub.s32 0, %v753
    %v755 = vrot.slane %v750, %v754
    %v756 = vlaneseq
    %v757 = vshrl.u32 %v756, 7
    %v758 = vsub.s32 1, %v757
    %v759 = vrot.slane %v750, %v758
    %v760 = vlaneseq
    %v761 = vshrl.u32 %v760, 7
    %v762 = vsub.s32 2, %v761
    %v763 = vrot.slane %v750, %v762
    %v764 = vlaneseq
    %v765 = vshrl.u32 %v764, 7
    %v766 = vsub.s32 3, %v765
    %v767 = vrot.slane %v750, %v766
    %v768 = vlaneseq
    %v769 = vshrl.u32 %v768, 7
    %v770 = vsub.s32 4, %v769
    %v771 = vrot.slane %v750, %v770
    %v772 = vlaneseq
    %v773 = vshrl.u32 %v772, 7
    %v774 = vsub.s32 5, %v773
    %v775 = vrot.slane %v750, %v774
    %v782 = vadd.f32 %v744, %v755
    %v783 = vadd.f32 %v745, %v759
    %v784 = vadd.f32 %v746, %v763
    %v785 = vadd.f32 %v747, %v767
    %v786 = vadd.f32 %v748, %v771
    %v787 = vadd.f32 %v749, %v775
    %v788 = vpack.c.bf16 %v782, %v782
    %v789 = vpack.c.bf16 %v783, %v783
    %v790 = vpack.c.bf16 %v784, %v784
    %v791 = vpack.c.bf16 %v785, %v785
    %v792 = vpack.c.bf16 %v786, %v786
    %v793 = vpack.c.bf16 %v787, %v787
    %v794 = vld [vmem:[#allocation8] sm:$0xf]
    %v795 = vld [vmem:[#allocation8 + $0x4] sm:$0xf]
    %v796 = vld [vmem:[#allocation8 + $0x8] sm:$0xf]
    %v797 = vld [vmem:[#allocation8 + $0xc] sm:$0xf]
    %v798 = vld [vmem:[#allocation8 + $0x10] sm:$0xf]
    %v799 = vld [vmem:[#allocation8 + $0x14] sm:$0xf]
    %v800 = vld [vmem:[#allocation8 + $0x18] sm:$0xf]
    %v801 = vld [vmem:[#allocation8 + $0x1c] sm:$0xf]
    %v802 = vld [vmem:[#allocation8 + $0x20] sm:$0xf]
    %v803 = vld [vmem:[#allocation8 + $0x24] sm:$0xf]
    %v804 = vld [vmem:[#allocation8 + $0x28] sm:$0xf]
    %v805 = vld [vmem:[#allocation8 + $0x2c] sm:$0xf]
    %v806 = vld [vmem:[#allocation8 + $0x30] sm:$0xf]
    %v807 = vld [vmem:[#allocation8 + $0x34] sm:$0xf]
    %v808 = vld [vmem:[#allocation8 + $0x38] sm:$0xf]
    %v809 = vld [vmem:[#allocation8 + $0x3c] sm:$0xf]
    %v810 = vld [vmem:[#allocation8 + $0x40] sm:$0xf]
    %v811 = vld [vmem:[#allocation8 + $0x44] sm:$0xf]
    %v812 = vld [vmem:[#allocation8 + $0x48] sm:$0xf]
    %v813 = vld [vmem:[#allocation8 + $0x4c] sm:$0xf]
    %v814 = vld [vmem:[#allocation8 + $0x50] sm:$0xf]
    %v815 = vld [vmem:[#allocation8 + $0x54] sm:$0xf]
    %v816 = vld [vmem:[#allocation8 + $0x58] sm:$0xf]
    %v817 = vld [vmem:[#allocation8 + $0x5c] sm:$0xf]
    %v818 = vld [vmem:[#allocation8 + $0x60] sm:$0xf]
    %v819 = vld [vmem:[#allocation8 + $0x64] sm:$0xf]
    %v820 = vld [vmem:[#allocation8 + $0x68] sm:$0xf]
    %v821 = vld [vmem:[#allocation8 + $0x6c] sm:$0xf]
    %v822 = vld [vmem:[#allocation8 + $0x70] sm:$0xf]
    %v823 = vld [vmem:[#allocation8 + $0x74] sm:$0xf]
    %v824 = vld [vmem:[#allocation8 + $0x78] sm:$0xf]
    %v825 = vld [vmem:[#allocation8 + $0x7c] sm:$0xf]
    %v826 = vld [vmem:[#allocation8 + $0x80] sm:$0xf]
    %v827 = vld [vmem:[#allocation8 + $0x84] sm:$0xf]
    %v828 = vld [vmem:[#allocation8 + $0x88] sm:$0xf]
    %v829 = vld [vmem:[#allocation8 + $0x8c] sm:$0xf]
    %v830 = vld [vmem:[#allocation8 + $0x90] sm:$0xf]
    %v831 = vld [vmem:[#allocation8 + $0x94] sm:$0xf]
    %v832 = vld [vmem:[#allocation8 + $0x98] sm:$0xf]
    %v833 = vld [vmem:[#allocation8 + $0x9c] sm:$0xf]
    %v834 = vld [vmem:[#allocation8 + $0xa0] sm:$0xf]
    %v835 = vld [vmem:[#allocation8 + $0xa4] sm:$0xf]
    %v836 = vld [vmem:[#allocation8 + $0xa8] sm:$0xf]
    %v837 = vld [vmem:[#allocation8 + $0xac] sm:$0xf]
    %v838 = vld [vmem:[#allocation8 + $0xb0] sm:$0xf]
    %v839 = vld [vmem:[#allocation8 + $0xb4] sm:$0xf]
    %v840 = vld [vmem:[#allocation8 + $0xb8] sm:$0xf]
    %v841 = vld [vmem:[#allocation8 + $0xbc] sm:$0xf]
    %v842 = vld [vmem:[#allocation8 + $0xc0] sm:$0xf]
    %v843 = vld [vmem:[#allocation8 + $0xc4] sm:$0xf]
    %v844 = vld [vmem:[#allocation8 + $0xc8] sm:$0xf]
    %v845 = vld [vmem:[#allocation8 + $0xcc] sm:$0xf]
    %v846 = vld [vmem:[#allocation8 + $0xd0] sm:$0xf]
    %v847 = vld [vmem:[#allocation8 + $0xd4] sm:$0xf]
    %v848 = vld [vmem:[#allocation8 + $0xd8] sm:$0xf]
    %v849 = vld [vmem:[#allocation8 + $0xdc] sm:$0xf]
    %v850 = vld [vmem:[#allocation8 + $0xe0] sm:$0xf]
    %v851 = vld [vmem:[#allocation8 + $0xe4] sm:$0xf]
    %v852 = vld [vmem:[#allocation8 + $0xe8] sm:$0xf]
    %v853 = vld [vmem:[#allocation8 + $0xec] sm:$0xf]
    %v854 = vld [vmem:[#allocation8 + $0xf0] sm:$0xf]
    %v855 = vld [vmem:[#allocation8 + $0xf4] sm:$0xf]
    %v856 = vld [vmem:[#allocation8 + $0xf8] sm:$0xf]
    %v857 = vld [vmem:[#allocation8 + $0xfc] sm:$0xf]
    %v858 = vld [vmem:[#allocation8 + $0x100] sm:$0xf]
    %v859 = vld [vmem:[#allocation8 + $0x104] sm:$0xf]
    %v860 = vld [vmem:[#allocation8 + $0x108] sm:$0xf]
    %v861 = vld [vmem:[#allocation8 + $0x10c] sm:$0xf]
    %v862 = vld [vmem:[#allocation8 + $0x110] sm:$0xf]
    %v863 = vld [vmem:[#allocation8 + $0x114] sm:$0xf]
    %v864 = vld [vmem:[#allocation8 + $0x118] sm:$0xf]
    %v865 = vld [vmem:[#allocation8 + $0x11c] sm:$0xf]
    %v866 = vld [vmem:[#allocation8 + $0x120] sm:$0xf]
    %v867 = vld [vmem:[#allocation8 + $0x124] sm:$0xf]
    %v868 = vld [vmem:[#allocation8 + $0x128] sm:$0xf]
    %v869 = vld [vmem:[#allocation8 + $0x12c] sm:$0xf]
    %v870 = vld [vmem:[#allocation8 + $0x130] sm:$0xf]
    %v871 = vld [vmem:[#allocation8 + $0x134] sm:$0xf]
    %v872 = vld [vmem:[#allocation8 + $0x138] sm:$0xf]
    %v873 = vld [vmem:[#allocation8 + $0x13c] sm:$0xf]
    %v874 = vld [vmem:[#allocation8 + $0x140] sm:$0xf]
    %v875 = vld [vmem:[#allocation8 + $0x144] sm:$0xf]
    %v876 = vld [vmem:[#allocation8 + $0x148] sm:$0xf]
    %v877 = vld [vmem:[#allocation8 + $0x14c] sm:$0xf]
    %v878 = vld [vmem:[#allocation8 + $0x150] sm:$0xf]
    %v879 = vld [vmem:[#allocation8 + $0x154] sm:$0xf]
    %v880 = vld [vmem:[#allocation8 + $0x158] sm:$0xf]
    %v881 = vld [vmem:[#allocation8 + $0x15c] sm:$0xf]
    %v882 = vld [vmem:[#allocation8 + $0x160] sm:$0xf]
    %v883 = vld [vmem:[#allocation8 + $0x164] sm:$0xf]
    %v884 = vld [vmem:[#allocation8 + $0x168] sm:$0xf]
    %v885 = vld [vmem:[#allocation8 + $0x16c] sm:$0xf]
    %v886 = vld [vmem:[#allocation8 + $0x170] sm:$0xf]
    %v887 = vld [vmem:[#allocation8 + $0x174] sm:$0xf]
    %v888 = vld [vmem:[#allocation8 + $0x178] sm:$0xf]
    %v889 = vld [vmem:[#allocation8 + $0x17c] sm:$0xf]
    %v986 = vunpack.c.l.b16 %v794
    %v987 = vunpack.c.l.b16 %v795
    %v988 = vunpack.c.l.b16 %v796
    %v989 = vunpack.c.l.b16 %v797
    %v990 = vunpack.c.l.b16 %v798
    %v991 = vunpack.c.l.b16 %v799
    %v992 = vunpack.c.l.b16 %v800
    %v993 = vunpack.c.l.b16 %v801
    %v994 = vunpack.c.l.b16 %v802
    %v995 = vunpack.c.l.b16 %v803
    %v996 = vunpack.c.l.b16 %v804
    %v997 = vunpack.c.l.b16 %v805
    %v998 = vunpack.c.l.b16 %v806
    %v999 = vunpack.c.l.b16 %v807
    %v1000 = vunpack.c.l.b16 %v808
    %v1001 = vunpack.c.l.b16 %v809
    %v1002 = vunpack.c.l.b16 %v810
    %v1003 = vunpack.c.l.b16 %v811
    %v1004 = vunpack.c.l.b16 %v812
    %v1005 = vunpack.c.l.b16 %v813
    %v1006 = vunpack.c.l.b16 %v814
    %v1007 = vunpack.c.l.b16 %v815
    %v1008 = vunpack.c.l.b16 %v816
    %v1009 = vunpack.c.l.b16 %v817
    %v1010 = vunpack.c.l.b16 %v818
    %v1011 = vunpack.c.l.b16 %v819
    %v1012 = vunpack.c.l.b16 %v820
    %v1013 = vunpack.c.l.b16 %v821
    %v1014 = vunpack.c.l.b16 %v822
    %v1015 = vunpack.c.l.b16 %v823
    %v1016 = vunpack.c.l.b16 %v824
    %v1017 = vunpack.c.l.b16 %v825
    %v1018 = vunpack.c.l.b16 %v826
    %v1019 = vunpack.c.l.b16 %v827
    %v1020 = vunpack.c.l.b16 %v828
    %v1021 = vunpack.c.l.b16 %v829
    %v1022 = vunpack.c.l.b16 %v830
    %v1023 = vunpack.c.l.b16 %v831
    %v1024 = vunpack.c.l.b16 %v832
    %v1025 = vunpack.c.l.b16 %v833
    %v1026 = vunpack.c.l.b16 %v834
    %v1027 = vunpack.c.l.b16 %v835
    %v1028 = vunpack.c.l.b16 %v836
    %v1029 = vunpack.c.l.b16 %v837
    %v1030 = vunpack.c.l.b16 %v838
    %v1031 = vunpack.c.l.b16 %v839
    %v1032 = vunpack.c.l.b16 %v840
    %v1033 = vunpack.c.l.b16 %v841
    %v1034 = vunpack.c.l.b16 %v842
    %v1035 = vunpack.c.l.b16 %v843
    %v1036 = vunpack.c.l.b16 %v844
    %v1037 = vunpack.c.l.b16 %v845
    %v1038 = vunpack.c.l.b16 %v846
    %v1039 = vunpack.c.l.b16 %v847
    %v1040 = vunpack.c.l.b16 %v848
    %v1041 = vunpack.c.l.b16 %v849
    %v1042 = vunpack.c.l.b16 %v850
    %v1043 = vunpack.c.l.b16 %v851
    %v1044 = vunpack.c.l.b16 %v852
    %v1045 = vunpack.c.l.b16 %v853
    %v1046 = vunpack.c.l.b16 %v854
    %v1047 = vunpack.c.l.b16 %v855
    %v1048 = vunpack.c.l.b16 %v856
    %v1049 = vunpack.c.l.b16 %v857
    %v1050 = vunpack.c.l.b16 %v858
    %v1051 = vunpack.c.l.b16 %v859
    %v1052 = vunpack.c.l.b16 %v860
    %v1053 = vunpack.c.l.b16 %v861
    %v1054 = vunpack.c.l.b16 %v862
    %v1055 = vunpack.c.l.b16 %v863
    %v1056 = vunpack.c.l.b16 %v864
    %v1057 = vunpack.c.l.b16 %v865
    %v1058 = vunpack.c.l.b16 %v866
    %v1059 = vunpack.c.l.b16 %v867
    %v1060 = vunpack.c.l.b16 %v868
    %v1061 = vunpack.c.l.b16 %v869
    %v1062 = vunpack.c.l.b16 %v870
    %v1063 = vunpack.c.l.b16 %v871
    %v1064 = vunpack.c.l.b16 %v872
    %v1065 = vunpack.c.l.b16 %v873
    %v1066 = vunpack.c.l.b16 %v874
    %v1067 = vunpack.c.l.b16 %v875
    %v1068 = vunpack.c.l.b16 %v876
    %v1069 = vunpack.c.l.b16 %v877
    %v1070 = vunpack.c.l.b16 %v878
    %v1071 = vunpack.c.l.b16 %v879
    %v1072 = vunpack.c.l.b16 %v880
    %v1073 = vunpack.c.l.b16 %v881
    %v1074 = vunpack.c.l.b16 %v882
    %v1075 = vunpack.c.l.b16 %v883
    %v1076 = vunpack.c.l.b16 %v884
    %v1077 = vunpack.c.l.b16 %v885
    %v1078 = vunpack.c.l.b16 %v886
    %v1079 = vunpack.c.l.b16 %v887
    %v1080 = vunpack.c.l.b16 %v888
    %v1081 = vunpack.c.l.b16 %v889
    %v1082 = vpack.c.b16 %v987, %v986
    %v1083 = vpack.c.b16 %v989, %v988
    %v1084 = vpack.c.b16 %v991, %v990
    %v1085 = vpack.c.b16 %v993, %v992
    %v1086 = vpack.c.b16 %v995, %v994
    %v1087 = vpack.c.b16 %v997, %v996
    %v1088 = vpack.c.b16 %v999, %v998
    %v1089 = vpack.c.b16 %v1001, %v1000
    %v1090 = vpack.c.b16 %v1003, %v1002
    %v1091 = vpack.c.b16 %v1005, %v1004
    %v1092 = vpack.c.b16 %v1007, %v1006
    %v1093 = vpack.c.b16 %v1009, %v1008
    %v1094 = vpack.c.b16 %v1011, %v1010
    %v1095 = vpack.c.b16 %v1013, %v1012
    %v1096 = vpack.c.b16 %v1015, %v1014
    %v1097 = vpack.c.b16 %v1017, %v1016
    %v1098 = vpack.c.b16 %v1019, %v1018
    %v1099 = vpack.c.b16 %v1021, %v1020
    %v1100 = vpack.c.b16 %v1023, %v1022
    %v1101 = vpack.c.b16 %v1025, %v1024
    %v1102 = vpack.c.b16 %v1027, %v1026
    %v1103 = vpack.c.b16 %v1029, %v1028
    %v1104 = vpack.c.b16 %v1031, %v1030
    %v1105 = vpack.c.b16 %v1033, %v1032
    %v1106 = vpack.c.b16 %v1035, %v1034
    %v1107 = vpack.c.b16 %v1037, %v1036
    %v1108 = vpack.c.b16 %v1039, %v1038
    %v1109 = vpack.c.b16 %v1041, %v1040
    %v1110 = vpack.c.b16 %v1043, %v1042
    %v1111 = vpack.c.b16 %v1045, %v1044
    %v1112 = vpack.c.b16 %v1047, %v1046
    %v1113 = vpack.c.b16 %v1049, %v1048
    %v1114 = vpack.c.b16 %v1051, %v1050
    %v1115 = vpack.c.b16 %v1053, %v1052
    %v1116 = vpack.c.b16 %v1055, %v1054
    %v1117 = vpack.c.b16 %v1057, %v1056
    %v1118 = vpack.c.b16 %v1059, %v1058
    %v1119 = vpack.c.b16 %v1061, %v1060
    %v1120 = vpack.c.b16 %v1063, %v1062
    %v1121 = vpack.c.b16 %v1065, %v1064
    %v1122 = vpack.c.b16 %v1067, %v1066
    %v1123 = vpack.c.b16 %v1069, %v1068
    %v1124 = vpack.c.b16 %v1071, %v1070
    %v1125 = vpack.c.b16 %v1073, %v1072
    %v1126 = vpack.c.b16 %v1075, %v1074
    %v1127 = vpack.c.b16 %v1077, %v1076
    %v1128 = vpack.c.b16 %v1079, %v1078
    %v1129 = vpack.c.b16 %v1081, %v1080
    %1178 = vmatprep.subr.bf16.mxu0 0
    %1179 = vmatpush1.bf16.msra.mxu0 %v1082
    %1180 = vmatprep.subr.bf16.mxu0 0
    %1181 = vmatpush1.bf16.msra.mxu0 %v1083
    %1182 = vmatprep.subr.bf16.mxu0 0
    %1183 = vmatpush1.bf16.msra.mxu0 %v1084
    %1184 = vmatprep.subr.bf16.mxu0 0
    %1185 = vmatpush1.bf16.msra.mxu0 %v1085
    %1186 = vmatprep.subr.bf16.mxu0 0
    %1187 = vmatpush1.bf16.msra.mxu0 %v1086
    %1188 = vmatprep.subr.bf16.mxu0 0
    %1189 = vmatpush1.bf16.msra.mxu0 %v1087
    %1190 = vmatprep.subr.bf16.mxu0 0
    %1191 = vmatpush1.bf16.msra.mxu0 %v1088
    %1192 = vmatprep.subr.bf16.mxu0 0
    %1193 = vmatpush1.bf16.msra.mxu0 %v1089
    %1194 = vmatprep.subr.bf16.mxu0 0
    %1195 = vmatpush1.bf16.msra.mxu0 %v1090
    %1196 = vmatprep.subr.bf16.mxu0 0
    %1197 = vmatpush1.bf16.msra.mxu0 %v1091
    %1198 = vmatprep.subr.bf16.mxu0 0
    %1199 = vmatpush1.bf16.msra.mxu0 %v1092
    %1200 = vmatprep.subr.bf16.mxu0 0
    %1201 = vmatpush1.bf16.msra.mxu0 %v1093
    %1202 = vmatprep.subr.bf16.mxu0 0
    %1203 = vmatpush1.bf16.msra.mxu0 %v1094
    %1204 = vmatprep.subr.bf16.mxu0 0
    %1205 = vmatpush1.bf16.msra.mxu0 %v1095
    %1206 = vmatprep.subr.bf16.mxu0 0
    %1207 = vmatpush1.bf16.msra.mxu0 %v1096
    %1208 = vmatprep.subr.bf16.mxu0 0
    %1209 = vmatpush1.bf16.msra.mxu0 %v1097
    %1210 = vmatprep.mubr.bf16.mxu0 %v789
    %1211 = vmatmul.mubr.bf16.gmra.mrb[0].mxu0 %v788
    %v1212 = vpop.f32.mrb[0].mxu0
    %v1213 = vadd.f32 0.0, %v1212
    %v1214 = vpop.f32.mrb[0].mxu0
    %v1215 = vpop.f32.mrb[0].mxu0
    %v1216 = vpop.f32.mrb[0].mxu0
    %1217 = vdwg.mxu0
    %1218 = vmatprep.subr.bf16.mxu0 0
    %1219 = vmatpush1.bf16.msra.mxu0 %v1098
    %1220 = vmatprep.subr.bf16.mxu0 0
    %1221 = vmatpush1.bf16.msra.mxu0 %v1099
    %1222 = vmatprep.subr.bf16.mxu0 0
    %1223 = vmatpush1.bf16.msra.mxu0 %v1100
    %1224 = vmatprep.subr.bf16.mxu0 0
    %1225 = vmatpush1.bf16.msra.mxu0 %v1101
    %1226 = vmatprep.subr.bf16.mxu0 0
    %1227 = vmatpush1.bf16.msra.mxu0 %v1102
    %1228 = vmatprep.subr.bf16.mxu0 0
    %1229 = vmatpush1.bf16.msra.mxu0 %v1103
    %1230 = vmatprep.subr.bf16.mxu0 0
    %1231 = vmatpush1.bf16.msra.mxu0 %v1104
    %1232 = vmatprep.subr.bf16.mxu0 0
    %1233 = vmatpush1.bf16.msra.mxu0 %v1105
    %1234 = vmatprep.subr.bf16.mxu0 0
    %1235 = vmatpush1.bf16.msra.mxu0 %v1106
    %1236 = vmatprep.subr.bf16.mxu0 0
    %1237 = vmatpush1.bf16.msra.mxu0 %v1107
    %1238 = vmatprep.subr.bf16.mxu0 0
    %1239 = vmatpush1.bf16.msra.mxu0 %v1108
    %1240 = vmatprep.subr.bf16.mxu0 0
    %1241 = vmatpush1.bf16.msra.mxu0 %v1109
    %1242 = vmatprep.subr.bf16.mxu0 0
    %1243 = vmatpush1.bf16.msra.mxu0 %v1110
    %1244 = vmatprep.subr.bf16.mxu0 0
    %1245 = vmatpush1.bf16.msra.mxu0 %v1111
    %1246 = vmatprep.subr.bf16.mxu0 0
    %1247 = vmatpush1.bf16.msra.mxu0 %v1112
    %1248 = vmatprep.subr.bf16.mxu0 0
    %1249 = vmatpush1.bf16.msra.mxu0 %v1113
    %1250 = vmatprep.mubr.bf16.mxu0 %v791
    %1251 = vmatmul.mubr.bf16.gmra.mrb[0].mxu0 %v790
    %v1252 = vpop.f32.mrb[0].mxu0
    %v1253 = vadd.f32 %v1213, %v1252
    %v1254 = vpop.f32.mrb[0].mxu0
    %v1255 = vpop.f32.mrb[0].mxu0
    %v1256 = vpop.f32.mrb[0].mxu0
    %1257 = vdwg.mxu0
    %1258 = vmatprep.subr.bf16.mxu0 0
    %1259 = vmatpush1.bf16.msra.mxu0 %v1114
    %1260 = vmatprep.subr.bf16.mxu0 0
    %1261 = vmatpush1.bf16.msra.mxu0 %v1115
    %1262 = vmatprep.subr.bf16.mxu0 0
    %1263 = vmatpush1.bf16.msra.mxu0 %v1116
    %1264 = vmatprep.subr.bf16.mxu0 0
    %1265 = vmatpush1.bf16.msra.mxu0 %v1117
    %1266 = vmatprep.subr.bf16.mxu0 0
    %1267 = vmatpush1.bf16.msra.mxu0 %v1118
    %1268 = vmatprep.subr.bf16.mxu0 0
    %1269 = vmatpush1.bf16.msra.mxu0 %v1119
    %1270 = vmatprep.subr.bf16.mxu0 0
    %1271 = vmatpush1.bf16.msra.mxu0 %v1120
    %1272 = vmatprep.subr.bf16.mxu0 0
    %1273 = vmatpush1.bf16.msra.mxu0 %v1121
    %1274 = vmatprep.subr.bf16.mxu0 0
    %1275 = vmatpush1.bf16.msra.mxu0 %v1122
    %1276 = vmatprep.subr.bf16.mxu0 0
    %1277 = vmatpush1.bf16.msra.mxu0 %v1123
    %1278 = vmatprep.subr.bf16.mxu0 0
    %1279 = vmatpush1.bf16.msra.mxu0 %v1124
    %1280 = vmatprep.subr.bf16.mxu0 0
    %1281 = vmatpush1.bf16.msra.mxu0 %v1125
    %1282 = vmatprep.subr.bf16.mxu0 0
    %1283 = vmatpush1.bf16.msra.mxu0 %v1126
    %1284 = vmatprep.subr.bf16.mxu0 0
    %1285 = vmatpush1.bf16.msra.mxu0 %v1127
    %1286 = vmatprep.subr.bf16.mxu0 0
    %1287 = vmatpush1.bf16.msra.mxu0 %v1128
    %1288 = vmatprep.subr.bf16.mxu0 0
    %1289 = vmatpush1.bf16.msra.mxu0 %v1129
    %1290 = vmatprep.mubr.bf16.mxu0 %v793
    %1291 = vmatmul.mubr.bf16.gmra.mrb[0].mxu0 %v792
    %v1292 = vpop.f32.mrb[0].mxu0
    %v1293 = vadd.f32 %v1253, %v1292
    %v1294 = vpop.f32.mrb[0].mxu0
    %v1295 = vpop.f32.mrb[0].mxu0
    %v1296 = vpop.f32.mrb[0].mxu0
    %1297 = vdwg.mxu0
    %1298 = vst [vmem:[#allocation10] sm:$0xff] %v1293
    // Predicated region
    $region42: #{tpu_custom_call.1} parent=1 // pred_check
      _
    $region43: #{tpu_custom_call.1} parent=1 // pred_check_branch
      %1300 = sbr.rel (0) target = $region45
    $region44: #{tpu_custom_call.1} parent=1 // pred_region
      %s1302 = ssub.s32 128, 128
      %1303 = vsyncadd [#allocation4], %s1302
      %s1305 = sshll.u32 [#allocation10], 4
      %s1306 = int_to_ptr.vmem [resolvable:$true] %s1305
      %1308 = dma.vmem_to_hbm [thread:$0]  %s1306, 128, %s6, [#allocation4]
    $region45: #{tpu_custom_call.1} parent=1 // pred_fallthru
      _
    // Predicated region
    $region46: #{tpu_custom_call.1} parent=1 // pred_check
      _
    $region47: #{tpu_custom_call.1} parent=1 // pred_check_branch
      %1310 = sbr.rel (0) target = $region49
    $region48: #{tpu_custom_call.1} parent=1 // pred_region
      %1311 = dma.done [#allocation4], 128
    $region49: #{tpu_custom_call.1} parent=1 // pred_fallthru
      _
    %1312 = vsyncpa [#allocation3], 1
    %1313 = vsyncpa [#allocation6], 1
    %1314 = vsyncpa [#allocation9], 1
    %1315 = vsyncpa [#allocation4], 1

</llo_original>
